<compile_context>
chip_gen: v6e
topology: v6e:2x2x1
jax: 0.10.0
libtpu: 0.0.40
codegen_flags: <defaults>
</compile_context>

<pallas_src>
import functools

import jax
import jax.numpy as jnp
from jax.experimental import pallas as pl
from jax.experimental.pallas import tpu as pltpu


def _round_up(v: int, m: int) -> int:
    return (v + m - 1) // m * m


def _vmem_capacity_bytes() -> int:
    """Physical VMEM per TensorCore; conservative fallback if the query fails."""
    try:
        info = pltpu.get_tpu_info()
        cap = getattr(info, "vmem_capacity_bytes", None)
        if cap:
            return int(cap)
    except Exception:
        pass
    return 64 * 1024 * 1024  # v7x per-core size == safe lower bound everywhere


def _choose_chunk(total: int, target: int) -> int:
    """Largest chunk <= target that divides `total`, preferring multiples of 128."""
    if total <= target:
        return total
    t = target - (target % 128)
    while t >= 128:
        if total % t == 0:
            return t
        t -= 128
    for t in range(min(target, total), 0, -1):
        if total % t == 0:
            return t
    return total


# --------------------------------------------------------------------------
# Fast path: whole (G, 1, C, HW) group slab resident in VMEM.  grid = (N,).
# Single read of x, single write of the (C+1)-channel output.
# --------------------------------------------------------------------------
def _fused_kernel(x_ref, o_ref, *, alpha: float, inv_feat: float):
    # x_ref : (G, 1, C,   HW)   o_ref : (G, 1, C+1, HW)
    G, _, C, T = x_ref.shape
    xb = x_ref[...]                                     # single HBM->VMEM load
    xf = xb.astype(jnp.float32)
    m = jnp.mean(xf, axis=0)                            # (1, C, T)
    ss = jnp.mean(xf * xf, axis=0)                      # (1, C, T)
    std = jnp.sqrt(jnp.maximum(ss - m * m, 0.0) + alpha)  # single-pass variance
    stat = jnp.sum(std) * inv_feat                      # per-group scalar
    o_ref[:, :, :C, :] = xb.astype(o_ref.dtype)         # passthrough channels
    o_ref[:, :, C:, :] = jnp.broadcast_to(
        stat, (G, 1, 1, T)).astype(o_ref.dtype)         # stat channel


# --------------------------------------------------------------------------
# Chunked fallback (huge HW only): grid = (N, 2, S), 2-phase reduce/write with
# a (1, 1, T) f32 accumulator (channel-reduced per chunk) and an SMEM scalar.
# --------------------------------------------------------------------------
def _chunked_kernel(x_ref, o_ref, acc_ref, stat_ref, *, alpha: float,
                    inv_feat: float):
    # x_ref : (G, 1, C,   T)   o_ref : (G, 1, C+1, T)
    # acc_ref : VMEM (1, 1, T) f32    stat_ref : SMEM (1,) f32
    G, _, C, T = x_ref.shape
    p = pl.program_id(1)          # phase: 0 = reduce, 1 = write
    s = pl.program_id(2)          # spatial chunk index
    num_s = pl.num_programs(2)

    @pl.when(p == 0)
    def _reduce_phase():
        xf = x_ref[...].astype(jnp.float32)                     # (G, 1, C, T)
        m = jnp.mean(xf, axis=0)                                # (1, C, T)
        ss = jnp.mean(xf * xf, axis=0)
        std = jnp.sqrt(jnp.maximum(ss - m * m, 0.0) + alpha)    # (1, C, T)
        part = jnp.sum(std, axis=1, keepdims=True)              # (1, 1, T)

        @pl.when(s == 0)
        def _init():
            acc_ref[...] = part

        @pl.when(s > 0)
        def _accumulate():
            acc_ref[...] += part

        @pl.when(s == num_s - 1)
        def _finalize():
            stat_ref[0] = jnp.sum(acc_ref[...]) * inv_feat

    @pl.when(p == 1)
    def _write_phase():
        xb = x_ref[...]
        o_ref[:, :, :C, :] = xb.astype(o_ref.dtype)             # no f32 round-trip
        stat = stat_ref[0]
        o_ref[:, :, C:, :] = jnp.broadcast_to(
            stat, (G, 1, 1, T)).astype(o_ref.dtype)


def minibatch_stddev(x: jax.Array, group_size: int = 4, alpha: float = 1e-8, *,
                     max_chunk: int | None = None) -> jax.Array:
    B, C, H, W = x.shape
    if B > group_size:
        assert B % group_size == 0, (
            f"batch_size {B} should be perfectly divisible by group_size {group_size}"
        )
        g = group_size
    else:
        g = B
    N = B // g
    HW = H * W
    isz = jnp.dtype(x.dtype).itemsize
    inv_feat = 1.0 / float(C * HW)

    # ---- per-generation VMEM budget (v5e/v6e: 128 MiB, v7x: 64 MiB/TC) ----
    vmem_cap = _vmem_capacity_bytes()
    vmem_limit = int(vmem_cap * 3 // 4)        # 128 MiB -> 96 MiB, 64 MiB -> 48 MiB
    budget = int(vmem_cap * 0.65)              # sizing budget (headroom for scratch)

    # Per-lane VMEM bytes: double-buffered in/out blocks + f32 working set
    # (cast slab, x*x temporary, per-feature intermediates) + accumulator row.
    c_in = _round_up(C, 8)
    c_out = _round_up(C + 1, 8)
    per_lane = (2 * g * c_in * isz            # input blocks (2 pipeline buffers)
                + 2 * g * c_out * isz         # output blocks
                + 3 * g * c_in * 4            # f32 temporaries of the group slab
                + 4 * c_in * 4                # (1, C, T) f32 intermediates
                + 8 * 4)                      # accumulator row (sublane padded)

    fits_one = per_lane * _round_up(HW, 128) <= budget
    use_fast = fits_one and (max_chunk is None or max_chunk >= HW)

    # Free reshape: (B, C, H, W) -> (G, N, C, H*W).
    x4 = x.reshape(g, N, C, HW)

    if use_fast:
        kernel = functools.partial(_fused_kernel, alpha=float(alpha),
                                   inv_feat=inv_feat)
        bytes_accessed = int(isz) * (B * C * HW + B * (C + 1) * HW)   # R + W
        out4 = pl.pallas_call(
            kernel,
            out_shape=jax.ShapeDtypeStruct((g, N, C + 1, HW), x.dtype),
            grid_spec=pltpu.PrefetchScalarGridSpec(
                num_scalar_prefetch=0,
                grid=(N,),
                in_specs=[pl.BlockSpec((g, 1, C, HW), lambda n: (0, n, 0, 0))],
                out_specs=pl.BlockSpec((g, 1, C + 1, HW), lambda n: (0, n, 0, 0)),
            ),
            compiler_params=pltpu.CompilerParams(
                dimension_semantics=("parallel",),
                vmem_limit_bytes=vmem_limit,
            ),
            cost_estimate=pl.CostEstimate(
                flops=6 * B * C * HW,
                transcendentals=N * C * HW,
                bytes_accessed=bytes_accessed,
            ),
        )(x4)
    else:
        target = max(128, budget // per_lane)
        if max_chunk is not None:
            target = max(1, min(target, max_chunk))
        T = _choose_chunk(HW, min(target, HW))
        S = HW // T

        kernel = functools.partial(_chunked_kernel, alpha=float(alpha),
                                   inv_feat=inv_feat)
        bytes_accessed = int(isz) * (2 * B * C * HW + B * (C + 1) * HW)  # 2R + W
        out4 = pl.pallas_call(
            kernel,
            out_shape=jax.ShapeDtypeStruct((g, N, C + 1, HW), x.dtype),
            grid_spec=pltpu.PrefetchScalarGridSpec(
                num_scalar_prefetch=0,
                grid=(N, 2, S),
                in_specs=[
                    pl.BlockSpec((g, 1, C, T), lambda n, p, s: (0, n, 0, s)),
                ],
                # phase 0: output block stays at (0, n, 0, 0) (resident, never
                # flushed until written at phase 1 chunk 0); phase 1: advance.
                out_specs=pl.BlockSpec((g, 1, C + 1, T),
                                       lambda n, p, s: (0, n, 0, p * s)),
                scratch_shapes=[
                    pltpu.VMEM((1, 1, T), jnp.float32),
                    pltpu.SMEM((1,), jnp.float32),
                ],
            ),
            compiler_params=pltpu.CompilerParams(
                dimension_semantics=("parallel", "arbitrary", "arbitrary"),
                vmem_limit_bytes=vmem_limit,
            ),
            cost_estimate=pl.CostEstimate(
                flops=6 * B * C * HW,
                transcendentals=N * C * HW,
                bytes_accessed=bytes_accessed,
            ),
        )(x4)

    return out4.reshape(B, C + 1, H, W)


def _reference(x: jax.Array, group_size: int = 4, alpha: float = 1e-8) -> jax.Array:
    # Pure-JAX transcription of the PyTorch forward, for verification.
    B, C, H, W = x.shape
    g = group_size if B > group_size else B
    y = x.reshape(g, -1, C, H, W).astype(jnp.float32)
    y = y - y.mean(axis=0, keepdims=True)
    y = jnp.sqrt(jnp.square(y).mean(axis=0) + alpha)
    y = y.mean(axis=(1, 2, 3), keepdims=True)      # (B//g, 1, 1, 1)
    y = jnp.tile(y, (g, 1, H, W))                  # (B, 1, H, W)
    return jnp.concatenate([x, y.astype(x.dtype)], axis=1)


if __name__ == "__main__":
    key = jax.random.PRNGKey(0)
    B, C, H, W = 8, 4, 16, 16  # group_size=4 -> 2 groups, HW=256 (lane-dense)
    x = jax.random.normal(key, (B, C, H, W), dtype=jnp.float32)
    ref = _reference(x, group_size=4)

    # Case 1: fast path (whole group slab resident, single read/write).
    out = jax.block_until_ready(minibatch_stddev(x, group_size=4))
    assert out.shape == (B, C + 1, H, W), out.shape
    assert jnp.allclose(out, ref, atol=1e-5, rtol=1e-5), (
        f"max abs err = {jnp.max(jnp.abs(out - ref))}")

    # Case 2: force the chunked fallback (S > 1) to exercise the accumulator path.
    out2 = jax.block_until_ready(minibatch_stddev(x, group_size=4, max_chunk=128))
    assert jnp.allclose(out2, ref, atol=1e-5, rtol=1e-5), (
        f"max abs err = {jnp.max(jnp.abs(out2 - ref))}")

    # Case 3: batch <= group_size -> single group of size B (N == 1).
    x3 = jax.random.normal(jax.random.PRNGKey(1), (2, C, H, W), dtype=jnp.float32)
    ref3 = _reference(x3, group_size=4)
    out3 = jax.block_until_ready(minibatch_stddev(x3, group_size=4))
    assert out3.shape == (2, C + 1, H, W), out3.shape
    assert jnp.allclose(out3, ref3, atol=1e-5, rtol=1e-5), (
        f"max abs err = {jnp.max(jnp.abs(out3 - ref3))}")

    # Case 4: ProGAN-like small spatial map (HW < 128), many channels.
    x4 = jax.random.normal(jax.random.PRNGKey(2), (8, 32, 4, 4), dtype=jnp.float32)
    ref4 = _reference(x4, group_size=4)
    out4 = jax.block_until_ready(minibatch_stddev(x4, group_size=4))
    assert out4.shape == (8, 33, 4, 4), out4.shape
    assert jnp.allclose(out4, ref4, atol=1e-5, rtol=1e-5), (
        f"max abs err = {jnp.max(jnp.abs(out4 - ref4))}")

    print("KERNEL_OK")
</pallas_src>

<mosaic_0001>
module attributes {stable_mosaic.version = 11 : i64} {
  func.func @_fused_kernel(%arg0: i32, %arg1: memref<4x1x4x256xf32, #tpu.memory_space<vmem>>, %arg2: memref<4x1x5x256xf32, #tpu.memory_space<vmem>>) attributes {dimension_semantics = [#tpu.dimension_semantics<parallel>], iteration_bounds = array<i64: 2>, scalar_prefetch = 0 : i64, scratch_operands = 0 : i64, tpu.core_type = #tpu.core_type<tc>, window_params = [{transform_indices = @transform_0, window_bounds = array<i64: 4, 1, 4, 256>}, {transform_indices = @transform_1, window_bounds = array<i64: 4, 1, 5, 256>}]} {
    %c0 = arith.constant 0 : index
    %c0_0 = arith.constant 0 : index
    %c0_1 = arith.constant 0 : index
    %c0_2 = arith.constant 0 : index
    %0 = vector.load %arg1[%c0, %c0_0, %c0_1, %c0_2] : memref<4x1x4x256xf32, #tpu.memory_space<vmem>>, vector<4x1x4x256xf32>
    %cst = arith.constant dense<0.000000e+00> : vector<1x4x256xf32>
    %1 = vector.multi_reduction <add>, %0, %cst [0] : vector<4x1x4x256xf32> to vector<1x4x256xf32>
    %cst_3 = arith.constant 4.000000e+00 : f32
    %2 = vector.broadcast %cst_3 : f32 to vector<1x4x256xf32>
    %3 = arith.divf %1, %2 : vector<1x4x256xf32>
    %4 = arith.mulf %0, %0 : vector<4x1x4x256xf32>
    %cst_4 = arith.constant dense<0.000000e+00> : vector<1x4x256xf32>
    %5 = vector.multi_reduction <add>, %4, %cst_4 [0] : vector<4x1x4x256xf32> to vector<1x4x256xf32>
    %cst_5 = arith.constant 4.000000e+00 : f32
    %6 = vector.broadcast %cst_5 : f32 to vector<1x4x256xf32>
    %7 = arith.divf %5, %6 : vector<1x4x256xf32>
    %8 = arith.mulf %3, %3 : vector<1x4x256xf32>
    %9 = arith.subf %7, %8 : vector<1x4x256xf32>
    %cst_6 = arith.constant 0.000000e+00 : f32
    %10 = vector.broadcast %cst_6 : f32 to vector<1x4x256xf32>
    %11 = arith.maximumf %9, %10 : vector<1x4x256xf32>
    %cst_7 = arith.constant 9.99999993E-9 : f32
    %12 = vector.broadcast %cst_7 : f32 to vector<1x4x256xf32>
    %13 = arith.addf %11, %12 : vector<1x4x256xf32>
    %14 = math.sqrt %13 : vector<1x4x256xf32>
    %15 = vector.shape_cast %14 : vector<1x4x256xf32> to vector<1x1x4x256xf32>
    %cst_8 = arith.constant dense<0.000000e+00> : vector<1xf32>
    %16 = vector.multi_reduction <add>, %15, %cst_8 [1, 2, 3] : vector<1x1x4x256xf32> to vector<1xf32>
    %17 = vector.shape_cast %16 : vector<1xf32> to vector<1x1x1x1xf32>
    %18 = vector.extract %17[0, 0, 0, 0] : f32 from vector<1x1x1x1xf32>
    %cst_9 = arith.constant 9.765625E-4 : f32
    %19 = arith.mulf %18, %cst_9 : f32
    %c0_10 = arith.constant 0 : index
    %c0_11 = arith.constant 0 : index
    %c0_12 = arith.constant 0 : index
    %c0_13 = arith.constant 0 : index
    %20 = vector.load %arg2[%c0_10, %c0_11, %c0_12, %c0_13] : memref<4x1x5x256xf32, #tpu.memory_space<vmem>>, vector<4x1x4x256xf32>
    tpu.vector_store %arg2[%c0_10, %c0_11, %c0_12, %c0_13], %0 {strides = array<i32>} : memref<4x1x5x256xf32, #tpu.memory_space<vmem>>, vector<4x1x4x256xf32>,
    %21 = vector.broadcast %19 : f32 to vector<4x1x1x256xf32>
    %c0_14 = arith.constant 0 : index
    %c0_15 = arith.constant 0 : index
    %c4 = arith.constant 4 : index
    %c0_16 = arith.constant 0 : index
    %22 = vector.load %arg2[%c0_14, %c0_15, %c4, %c0_16] : memref<4x1x5x256xf32, #tpu.memory_space<vmem>>, vector<4x1x1x256xf32>
    tpu.vector_store %arg2[%c0_14, %c0_15, %c4, %c0_16], %21 {strides = array<i32>} : memref<4x1x5x256xf32, #tpu.memory_space<vmem>>, vector<4x1x1x256xf32>,
    return
  }
  func.func @transform_0(%arg0: i32) -> (i32, i32, i32, i32) {
    %c0_i32 = arith.constant 0 : i32
    %c0_i32_0 = arith.constant 0 : i32
    %c0_i32_1 = arith.constant 0 : i32
    %c0_i32_2 = arith.constant 0 : i32
    return %c0_i32, %arg0, %c0_i32_0, %c0_i32_1 : i32, i32, i32, i32
  }
  func.func @transform_1(%arg0: i32) -> (i32, i32, i32, i32) {
    %c0_i32 = arith.constant 0 : i32
    %c0_i32_0 = arith.constant 0 : i32
    %c0_i32_1 = arith.constant 0 : i32
    %c0_i32_2 = arith.constant 0 : i32
    return %c0_i32, %arg0, %c0_i32_0, %c0_i32_1 : i32, i32, i32, i32
  }
}

</mosaic_0001>

<llo_original>
// kernel: tpu_custom_call.1
$region0: #{tpu_custom_call.1}
  #allocation0 [shape = 'u32[]', space=smem, size = 0x4, offset = 0x4, fixed_abs, tag = 'smem constant byte address 0x4 - core index']
  #allocation1 [shape = 'u32[144,128]{1,0:T(1,128)}', space=vmem, size = 0x12000, scoped, tag = 'internal scratch']
  %s0 = inlined_call_operand.hbm [shape: f32[4,2,4,256], index: 0, kind: input, shape index: {}]
  %s1 = inlined_call_operand.vmem [shape: f32[4,2,5,256], index: 1, kind: output, shape index: {}]
  %s2 = sld [smem:[#allocation0]]
  $region60: #{tpu_custom_call.1} parent=0
    _
  %s4 = ssub.s32 1, %s2
  %s5 = scalar_select 0, %s4, %s2
  $region1: #{tpu_custom_call.1} parent=0
    #allocation2 [shape = 'u8[32768]{0}', space=vmem, size = 0x8000, scoped, tag = 'input window, operand 0']
    #allocation3 [shape = 's32[2]{0}', space=sflag, size = 0x8, scoped, tag = 'scoped memory for tpu_custom_call.1']
    #allocation4 [shape = 'u8[65536]{0}', space=vmem, size = 0x10000, scoped, tag = 'output window, operand 0']
    %6 = vsyncpa [#allocation3], 0
    %s7 = scalar_lea.sflag [#allocation3], 1
    %8 = vsyncpa %s7, 0
    loop: start=0, step=1, limit=4
    $region2: #{tpu_custom_call.1} parent=1 // loop_pre_header
      _
    $region3: #{tpu_custom_call.1} parent=1 // loop_header
      %s10 = sphi 0, %s14
      %p11 = scmp.ge.s32.totalorder %s10, 4
      %s20 = sphi 0, %s22
      %s23 = sphi 0, %s20
      %s24 = sphi 0, %s23
      %s40 = sphi 0, %s24
      %s46 = sphi 0, %s48
      %s49 = sphi 0, %s46
      %s50 = sphi 0, %s49
      %s66 = sphi 0, %s50
    $region4: #{tpu_custom_call.1} parent=1 // loop_header_branch
      %13 = sbr.rel (%p11) target = $region8
    $region5: #{tpu_custom_call.1} parent=1 // loop_body
      %s15 = ssub.s32 %s10, 1
      %s16 = ssub.s32 %s10, 2
      %s17 = sadd.s32 %s10, 1
      %s18 = ssub.s32 %s10, %s17
      %p19 = scmp.eq.s32.totalorder %s18, 0
      %s21 = sadd.s32 %s20, 1
      %s22 = scalar_select %p19, %s20, %s21
      %p25 = pneg %p19
      %p26 = scmp.eq.s32.totalorder %s10, 1
      %p27 = por %p25, %p26
      %p28 = scmp.ne.s32.totalorder %s20, %s23
      %p29 = scmp.eq.s32.totalorder %s10, 0
      %p30 = por %p28, %p29
      %p31 = scmp.ne.s32.totalorder %s20, %s23
      %p32 = scmp.eq.s32.totalorder %s15, 1
      %p33 = por %p31, %p32
      %p34 = scmp.ne.s32.totalorder %s23, %s24
      %p35 = scmp.eq.s32.totalorder %s15, 0
      %p36 = por %p34, %p35
      %p37 = scmp.ne.s32.totalorder %s23, %s24
      %p38 = scmp.eq.s32.totalorder %s16, 1
      %p39 = por %p37, %p38
      %p41 = scmp.ne.s32.totalorder %s24, %s40
      %p42 = scmp.eq.s32.totalorder %s16, 0
      %p43 = por %p41, %p42
      %s44 = ssub.s32 %s10, %s17
      %p45 = scmp.eq.s32.totalorder %s44, 0
      %s47 = sadd.s32 %s46, 1
      %s48 = scalar_select %p45, %s46, %s47
      %p51 = pneg %p45
      %p52 = scmp.eq.s32.totalorder %s10, 1
      %p53 = por %p51, %p52
      %p54 = scmp.ne.s32.totalorder %s46, %s49
      %p55 = scmp.eq.s32.totalorder %s10, 0
      %p56 = por %p54, %p55
      %p57 = scmp.ne.s32.totalorder %s46, %s49
      %p58 = scmp.eq.s32.totalorder %s15, 1
      %p59 = por %p57, %p58
      %p60 = scmp.ne.s32.totalorder %s49, %s50
      %p61 = scmp.eq.s32.totalorder %s15, 0
      %p62 = por %p60, %p61
      %p63 = scmp.ne.s32.totalorder %s49, %s50
      %p64 = scmp.eq.s32.totalorder %s16, 1
      %p65 = por %p63, %p64
      %p67 = scmp.ne.s32.totalorder %s50, %s66
      %p68 = scmp.eq.s32.totalorder %s16, 0
      %p69 = por %p67, %p68
      %p70 = scmp.le.s32.totalorder 1, %s10
      %p71 = scmp.lt.s32.totalorder %s10, 3
      %p72 = pnand %p70, %p71
      %p73 = pneg %p72
      // Predicated region
      $region9: #{tpu_custom_call.1} parent=5 // pred_check
        _
      $region10: #{tpu_custom_call.1} parent=5 // pred_check_branch
        %75 = sbr.rel (%p72) target = $region12
      $region11: #{tpu_custom_call.1} parent=5 // pred_region
        %s76 = ssub.s32 %s10, 1
      $region12: #{tpu_custom_call.1} parent=5 // pred_fallthru
        _
      %p77 = scmp.lt.s32.totalorder %s10, 2
      // Predicated region
      $region13: #{tpu_custom_call.1} parent=5 // pred_check
        %p78 = pneg %p77
      $region14: #{tpu_custom_call.1} parent=5 // pred_check_branch
        %80 = sbr.rel (%p78) target = $region16
      $region15: #{tpu_custom_call.1} parent=5 // pred_region
        // Predicated region
        $region17: #{tpu_custom_call.1} parent=15 // pred_check
          %p81 = pneg %p30
        $region18: #{tpu_custom_call.1} parent=15 // pred_check_branch
          %83 = sbr.rel (%p81) target = $region20
        $region19: #{tpu_custom_call.1} parent=15 // pred_region
          %s84 = sand.u32 %s20, 1
          %s85 = scalar_lea.sflag [#allocation3], %s84
          %s86 = sand.u32 %s20, 1
          %s87 = smul.addr %s86, 32
          %s88 = scalar_lea.vmem [#allocation2], %s87
          %s90 = ssub.s32 512, 512
          %91 = vsyncadd %s85, %s90
          %s92 = smul.addr %s10, 2
          %s93 = smul.addr %s92, 64
          %s94 = scalar_lea.hbm %s0, %s93
          %s95 = sshll.u32 %s88, 4
          %s96 = int_to_ptr.vmem [resolvable:$true] %s95
          %101 = dma.hbm_to_vmem [thread:$0]  %s94, 512, %s96, %s85, 256, 128, 8
        $region20: #{tpu_custom_call.1} parent=15 // pred_fallthru
          _
      $region16: #{tpu_custom_call.1} parent=5 // pred_fallthru
        _
      %p102 = scmp.le.s32.totalorder 1, %s10
      %p103 = scmp.lt.s32.totalorder %s10, 3
      %p104 = pnand %p102, %p103
      %p105 = pneg %p104
      // Predicated region
      $region21: #{tpu_custom_call.1} parent=5 // pred_check
        _
      $region22: #{tpu_custom_call.1} parent=5 // pred_check_branch
        %107 = sbr.rel (%p104) target = $region24
      $region23: #{tpu_custom_call.1} parent=5 // pred_region
        %s108 = ssub.s32 %s10, 1
        %s109 = sand.u32 %s23, 1
        %s110 = scalar_lea.sflag [#allocation3], %s109
        %s111 = sand.u32 %s23, 1
        %s112 = smul.addr %s111, 32
        %s113 = scalar_lea.vmem [#allocation2], %s112
        // Predicated region
        $region25: #{tpu_custom_call.1} parent=23 // pred_check
          %p114 = pneg %p36
        $region26: #{tpu_custom_call.1} parent=23 // pred_check_branch
          %116 = sbr.rel (%p114) target = $region28
        $region27: #{tpu_custom_call.1} parent=23 // pred_region
          %117 = dma.done %s110, 512
        $region28: #{tpu_custom_call.1} parent=23 // pred_fallthru
          _
        %s118 = sand.u32 %s23, 1
        %s119 = scalar_lea.sflag [#allocation3], %s118
        %s120 = sand.u32 %s23, 1
        %s121 = smul.addr %s120, 32
        %s122 = scalar_lea.vmem [#allocation2], %s121
        %p123 = pneg %p36
        %p124 = pneg %p33
        %p125 = pneg %p62
        %p126 = pneg %p59
        %s127 = sand.u32 %s49, 1
        %s128 = sand.u32 %s49, 1
        %s129 = smul.addr %s128, 64
        %s130 = scalar_lea.vmem [#allocation4], %s129
        %v131 = vld [vmem:[%s113] sm:$0xff]
        %v132 = vld [vmem:[%s113 + $0x8] sm:$0xff]
        %v133 = vld [vmem:[%s113 + $0x10] sm:$0xff]
        %v134 = vld [vmem:[%s113 + $0x18] sm:$0xff]
        %v139 = vcombine.high %v131, %v131
        %v140 = vcombine.high %v132, %v132
        %v141 = vcombine.high %v133, %v133
        %v142 = vcombine.high %v134, %v134
        %vm147 = vcmask 1043456
        %v148 = vsel %vm147, %v131, 0.0
        %v149 = vsel %vm147, %v132, 0.0
        %v150 = vadd.f32 %v148, %v149
        %v151 = vsel %vm147, %v133, 0.0
        %v152 = vadd.f32 %v150, %v151
        %v153 = vsel %vm147, %v134, 0.0
        %v154 = vadd.f32 %v152, %v153
        %v155 = vsel %vm147, %v139, 0.0
        %v156 = vsel %vm147, %v140, 0.0
        %v157 = vadd.f32 %v155, %v156
        %v158 = vsel %vm147, %v141, 0.0
        %v159 = vadd.f32 %v157, %v158
        %v160 = vsel %vm147, %v142, 0.0
        %v161 = vadd.f32 %v159, %v160
        %v162 = vrcp.pop 4.0
        %v163 = vmul.f32 %v154, %v162
        %v164 = vmul.f32 %v161, %v162
        %v165 = vmul.f32 %v131, %v131
        %v166 = vmul.f32 %v132, %v132
        %v167 = vmul.f32 %v133, %v133
        %v168 = vmul.f32 %v134, %v134
        %v173 = vcombine.high %v165, %v165
        %v174 = vcombine.high %v166, %v166
        %v175 = vcombine.high %v167, %v167
        %v176 = vcombine.high %v168, %v168
        %v181 = vsel %vm147, %v165, 0.0
        %v182 = vsel %vm147, %v166, 0.0
        %v183 = vadd.f32 %v181, %v182
        %v184 = vsel %vm147, %v167, 0.0
        %v185 = vadd.f32 %v183, %v184
        %v186 = vsel %vm147, %v168, 0.0
        %v187 = vadd.f32 %v185, %v186
        %v188 = vsel %vm147, %v173, 0.0
        %v189 = vsel %vm147, %v174, 0.0
        %v190 = vadd.f32 %v188, %v189
        %v191 = vsel %vm147, %v175, 0.0
        %v192 = vadd.f32 %v190, %v191
        %v193 = vsel %vm147, %v176, 0.0
        %v194 = vadd.f32 %v192, %v193
        %v195 = vmul.f32 %v187, %v162
        %v196 = vmul.f32 %v194, %v162
        %v197 = vmul.f32 %v163, %v163
        %v198 = vmul.f32 %v164, %v164
        %v199 = vsub.f32 %v195, %v197
        %v200 = vsub.f32 %v196, %v198
        %v201 = vmax.f32 %v199, 0.0
        %v202 = vmax.f32 %v200, 0.0
        %v203 = vadd.f32 %v201, 1e-08
        %v204 = vadd.f32 %v202, 1e-08
        %v205 = vrsqrt.pop %v203
        %v206 = vmul.f32 %v203, %v205
        %vm207 = vcmp.eq.f32.partialorder %v203, inf
        %v208 = vsel %vm207, %v203, %v206
        %vm209 = vcmp.eq.f32.partialorder %v203, 0.0
        %v210 = vand.u32 %v203, 2147483648
        %v211 = vsel %vm209, %v210, %v208
        %v212 = vrsqrt.pop %v204
        %v213 = vmul.f32 %v204, %v212
        %vm214 = vcmp.eq.f32.partialorder %v204, inf
        %v215 = vsel %vm214, %v204, %v213
        %vm216 = vcmp.eq.f32.partialorder %v204, 0.0
        %v217 = vand.u32 %v204, 2147483648
        %v218 = vsel %vm216, %v217, %v215
        %v219 = vsel %vm147, %v211, 0.0
        %v220 = vsel %vm147, %v218, 0.0
        %v221 = vadd.f32 %v219, %v220
        %222 = vadd.xlane.f32.xlu0 %v221
        %v223 = vpop.xlane.xlu0 %222
        %v224 = vrot.slane %v223, 4
        %v225 = vadd.f32 %v223, %v224
        %v226 = vrot.slane %v225, 2
        %v227 = vadd.f32 %v225, %v226
        %v228 = vrot.slane %v227, 1
        %v229 = vadd.f32 %v227, %v228
        %s230 = vtos %v229
        %s231 = smul.f32 %s230, 0.0009765625
        %232 = vst [vmem:[%s130] sm:$0xf] %v131
        %233 = vst [vmem:[%s130 + $0x8] sm:$0xf] %v139
        %234 = vst [vmem:[%s130 + $0x10] sm:$0xf] %v132
        %235 = vst [vmem:[%s130 + $0x18] sm:$0xf] %v140
        %236 = vst [vmem:[%s130 + $0x20] sm:$0xf] %v133
        %237 = vst [vmem:[%s130 + $0x28] sm:$0xf] %v141
        %238 = vst [vmem:[%s130 + $0x30] sm:$0xf] %v134
        %239 = vst [vmem:[%s130 + $0x38] sm:$0xf] %v142
        %v240 = vstv %s231
        %v241 = vlaneseq
        %vm242 = vcmp.ge.s32.totalorder %v241, 0
        %vm243 = vcmp.lt.s32.totalorder %v241, 256
        %vm244 = vmand %vm242, %vm243
        %s245 = scalar_lea.vmem %s130, 4 [#allocation4]
        %246 = vst.msk [vmem:[%s245] ss:$8 sm:$0x3] %vm244, %v240
        %247 = vst.msk [vmem:[%s245] ss:$8 sm:$0x0] %vm244, %v240
        %s248 = scalar_lea.vmem %s130, 20 [#allocation4]
        %249 = vst.msk [vmem:[%s248] ss:$8 sm:$0x3] %vm244, %v240
        %250 = vst.msk [vmem:[%s248] ss:$8 sm:$0x0] %vm244, %v240
        %s251 = scalar_lea.vmem %s130, 36 [#allocation4]
        %252 = vst.msk [vmem:[%s251] ss:$8 sm:$0x3] %vm244, %v240
        %253 = vst.msk [vmem:[%s251] ss:$8 sm:$0x0] %vm244, %v240
        %s254 = scalar_lea.vmem %s130, 52 [#allocation4]
        %255 = vst.msk [vmem:[%s254] ss:$8 sm:$0x3] %vm244, %v240
        %256 = vst.msk [vmem:[%s254] ss:$8 sm:$0x0] %vm244, %v240
        %s257 = sand.u32 %s49, 1
        %s258 = sand.u32 %s49, 1
        %s259 = smul.addr %s258, 64
        %s260 = scalar_lea.vmem [#allocation4], %s259
        // Predicated region
        $region29: #{tpu_custom_call.1} parent=23 // pred_check
          %p261 = pneg %p59
        $region30: #{tpu_custom_call.1} parent=23 // pred_check_branch
          %263 = sbr.rel (%p261) target = $region32
        $region31: #{tpu_custom_call.1} parent=23 // pred_region
          %s264 = smul.addr %s15, 2
          %s265 = smul.addr %s264, 8
          %s266 = scalar_lea.vmem %s1, %s265
          // Predicated region
          $region33: #{tpu_custom_call.1} parent=31 // pred_check
            _
          $region34: #{tpu_custom_call.1} parent=31 // pred_check_branch
            %268 = sbr.rel (0) target = $region36
          $region35: #{tpu_custom_call.1} parent=31 // pred_region
            // Predicated region
            $region37: #{tpu_custom_call.1} parent=35 // pred_check
              _
            $region38: #{tpu_custom_call.1} parent=35 // pred_check_branch
              %270 = sbr.rel (0) target = $region40
            $region39: #{tpu_custom_call.1} parent=35 // pred_region
              loop: start=0, step=1, limit=1
              $region41: #{tpu_custom_call.1} parent=39 // loop_pre_header
                _
              $region42: #{tpu_custom_call.1} parent=39 // loop_header
                %s272 = sphi 0, %s276
                %p273 = scmp.ge.s32.totalorder %s272, 1
                %s277 = sphi %s260, %s260
                %s278 = sphi %s266, %s266
              $region43: #{tpu_custom_call.1} parent=39 // loop_header_branch
                %275 = sbr.rel (%p273) target = $region47
              $region44: #{tpu_custom_call.1} parent=39 // loop_body
                %v279 = vld [vmem:[%s277] sm:$0xff]
                %280 = vst [vmem:[%s278] sm:$0xff] %v279
                %v281 = vld [vmem:[%s277 + $0x8] sm:$0xff]
                %282 = vst [vmem:[%s278 + $0x8] sm:$0xff] %v281
                %v283 = vld [vmem:[%s277 + $0x10] sm:$0xff]
                %284 = vst [vmem:[%s278 + $0x20] sm:$0xff] %v283
                %v285 = vld [vmem:[%s277 + $0x18] sm:$0xff]
                %286 = vst [vmem:[%s278 + $0x28] sm:$0xff] %v285
                %v287 = vld [vmem:[%s277 + $0x20] sm:$0xff]
                %288 = vst [vmem:[%s278 + $0x40] sm:$0xff] %v287
                %v289 = vld [vmem:[%s277 + $0x28] sm:$0xff]
                %290 = vst [vmem:[%s278 + $0x48] sm:$0xff] %v289
                %v291 = vld [vmem:[%s277 + $0x30] sm:$0xff]
                %292 = vst [vmem:[%s278 + $0x60] sm:$0xff] %v291
                %v293 = vld [vmem:[%s277 + $0x38] sm:$0xff]
                %294 = vst [vmem:[%s278 + $0x68] sm:$0xff] %v293
              $region45: #{tpu_custom_call.1} parent=39 // loop_footer
                %s276 = sadd.s32 1, %s272
              $region46: #{tpu_custom_call.1} parent=39 // loop_footer_branch
                %271 = sbr.rel target = $region42
              $region47: #{tpu_custom_call.1} parent=39 // loop_exit
                _
            $region40: #{tpu_custom_call.1} parent=35 // pred_fallthru
              _
            // Predicated region
            $region48: #{tpu_custom_call.1} parent=35 // pred_check
              _
            $region49: #{tpu_custom_call.1} parent=35 // pred_check_branch
              %296 = sbr.rel target = $region51
            $region50: #{tpu_custom_call.1} parent=35 // pred_region
              _
            $region51: #{tpu_custom_call.1} parent=35 // pred_fallthru
              _
          $region36: #{tpu_custom_call.1} parent=31 // pred_fallthru
            _
          %297 = vnop
        $region32: #{tpu_custom_call.1} parent=23 // pred_fallthru
          _
      $region24: #{tpu_custom_call.1} parent=5 // pred_fallthru
        _
      %p298 = scmp.le.s32.totalorder 2, %s10
      // Predicated region
      $region52: #{tpu_custom_call.1} parent=5 // pred_check
        %p299 = pneg %p298
      $region53: #{tpu_custom_call.1} parent=5 // pred_check_branch
        %301 = sbr.rel (%p299) target = $region55
      $region54: #{tpu_custom_call.1} parent=5 // pred_region
        %s302 = ssub.s32 %s10, 2
        // Predicated region
        $region56: #{tpu_custom_call.1} parent=54 // pred_check
          %p303 = pneg %p65
        $region57: #{tpu_custom_call.1} parent=54 // pred_check_branch
          %305 = sbr.rel (%p303) target = $region59
        $region58: #{tpu_custom_call.1} parent=54 // pred_region
          %s306 = sand.u32 %s50, 1
          %s307 = sand.u32 %s50, 1
          %s308 = smul.addr %s307, 64
          %s309 = scalar_lea.vmem [#allocation4], %s308
        $region59: #{tpu_custom_call.1} parent=54 // pred_fallthru
          _
      $region55: #{tpu_custom_call.1} parent=5 // pred_fallthru
        _
    $region6: #{tpu_custom_call.1} parent=1 // loop_footer
      %s14 = sadd.s32 1, %s10
    $region7: #{tpu_custom_call.1} parent=1 // loop_footer_branch
      %9 = sbr.rel target = $region3
    $region8: #{tpu_custom_call.1} parent=1 // loop_exit
      _
    %310 = vsyncpa [#allocation3], 1
    %s311 = scalar_lea.sflag [#allocation3], 1
    %312 = vsyncpa %s311, 1

</llo_original>
